<compile_context>
chip_gen: v7x
topology: tpu7x:2x2x1
jax: 0.10.0
libtpu: 0.0.40
codegen_flags: <defaults>
</compile_context>

<pallas_src>
import functools

import jax
import jax.numpy as jnp
from jax.experimental import pallas as pl
from jax.experimental.pallas import tpu as pltpu

GELU_CONST = 0.7978845608028654  # sqrt(2/pi)


def _gelu_new(x):
    # HF "gelu_new": 0.5*x*(1+tanh(sqrt(2/pi)*(x + 0.044715*x^3)))
    # Cubic factored as x*(1 + 0.044715*x*x) to save one VPU multiply.
    return 0.5 * x * (1.0 + jnp.tanh(GELU_CONST * x * (1.0 + 0.044715 * x * x)))


def _round_up(x, m):
    return ((x + m - 1) // m) * m


def _vmem_budget():
    """Per-generation VMEM limit + budget for explicit tile sizing."""
    cap = 64 * 1024 * 1024  # conservative fallback (v7x per-TC physical VMEM)
    try:
        info = pltpu.get_tpu_info()
        cap = int(getattr(info, "vmem_capacity_bytes", cap)) or cap
    except Exception:
        pass
    # Leave headroom for compiler-internal scratch / Mosaic-materialized temps.
    limit = int(cap * 0.85)
    budget = max(limit - (6 << 20), 16 << 20)
    return budget, limit


def _select_tiles(M, Dp, Ip, x_bytes, w_bytes, o_bytes, budget, sub):
    """Pick (tm, ti).  Prefer full weight residency (ti == Ip); otherwise
    stream weight slices with a large tm so the weight stream stays above the
    compute roofline."""
    m_al = _round_up(max(M, sub), sub)

    def vmem_cost(tm, ti, with_acc):
        cost = 2 * tm * Dp * x_bytes          # x tile, double-buffered
        cost += 2 * tm * Dp * o_bytes         # out tile, double-buffered
        cost += 2 * Dp * ti * w_bytes         # W1 slice, double-buffered
        cost += 2 * ti * Dp * w_bytes         # W2 slice, double-buffered
        cost += 2 * ti * 4 + 2 * Dp * 4       # f32 biases
        cost += tm * ti * 4                   # f32 gelu intermediate
        cost += tm * ti * w_bytes             # cast copy of h for 2nd matmul
        if with_acc:
            cost += tm * Dp * 4               # f32 accumulator scratch
        return cost

    # ti candidates: full residency first, then descending 128-multiples that
    # divide Ip exactly (keeps the grid exact and blocks lane-aligned).
    ti_cands = [Ip]
    for cand in range(Ip - 128, 0, -128):
        if Ip % cand == 0:
            ti_cands.append(cand)

    for ti in ti_cands:
        resident = (ti == Ip)
        # When streaming weights, bigger tm raises FLOP/byte on the weight stream.
        tm_prefs = ((512, 256, 128, 64, 32, 16, 8) if resident
                    else (1024, 768, 512, 384, 256, 128, 64, 32, 16, 8))
        for tm in tm_prefs:
            tm_c = min(_round_up(tm, sub), m_al)
            if vmem_cost(tm_c, ti, with_acc=not resident) <= budget:
                # Keep >=2 row tiles when possible so both v7x TensorCores get
                # work via the "parallel" row axis (halving tm never raises VMEM).
                if m_al // tm_c < 2 and m_al >= 2 * sub:
                    tm_half = _round_up(-(-m_al // 2), sub)
                    tm_c = min(tm_c, tm_half)
                return tm_c, ti
    return sub, 128


# --------------------------------------------------------------------------
# Kernels
# --------------------------------------------------------------------------

def _fused_fc_act(x_ref, w1_ref, b1_ref, w2_ref, *, primer_square):
    x = x_ref[...]
    if x.dtype != w1_ref.dtype:
        x = x.astype(w1_ref.dtype)
    # c_fc slice: (tm, D) @ (D, ti) + (1, ti) -> f32 on the MXU.
    h = jnp.dot(x, w1_ref[...], preferred_element_type=jnp.float32)
    h = h + b1_ref[...]
    # Elementwise path in f32 (tanh on the EUP; safe on v5e's f32-only VPU).
    h = _gelu_new(h)
    if primer_square:
        h = h * h
    if h.dtype != w2_ref.dtype:
        h = h.astype(w2_ref.dtype)
    # c_proj partial: (tm, ti) @ (ti, D) -> f32.
    return jnp.dot(h, w2_ref[...], preferred_element_type=jnp.float32)


def mlp_kernel_resident(x_ref, w1_ref, b1_ref, w2_ref, b2_ref, o_ref, *,
                        primer_square):
    # Single reduction step: weights are VMEM-resident (constant block index),
    # so write the output directly -- no accumulator read-modify-write pass.
    # TODO(synk): dropout (resid_pdrop) omitted -- eval-mode identity.
    y = _fused_fc_act(x_ref, w1_ref, b1_ref, w2_ref, primer_square=primer_square)
    o_ref[...] = (y + b2_ref[...]).astype(o_ref.dtype)


def mlp_kernel_streamed(x_ref, w1_ref, b1_ref, w2_ref, b2_ref, o_ref, acc_ref, *,
                        primer_square):
    j = pl.program_id(1)

    @pl.when(j == 0)
    def _():
        acc_ref[...] = jnp.zeros_like(acc_ref)

    acc_ref[...] += _fused_fc_act(x_ref, w1_ref, b1_ref, w2_ref,
                                  primer_square=primer_square)

    @pl.when(j == pl.num_programs(1) - 1)
    def _():
        # b2 added exactly once, in the finalize step.
        # TODO(synk): dropout (resid_pdrop) omitted -- eval-mode identity.
        o_ref[...] = (acc_ref[...] + b2_ref[...]).astype(o_ref.dtype)


# --------------------------------------------------------------------------
# Wrappers
# --------------------------------------------------------------------------

def pad_mlp_weights(w1, b1, w2, b2):
    """One-time weight preparation.

    Pads the model dim D and intermediate dim I up to multiples of 128 (zero
    padding is exact: zero h columns hit zero W2 rows, zero output columns are
    sliced off).  Hoisted out of the per-call path so the HBM copies of the
    weight matrices happen once at load time.
    """
    D, I = w1.shape
    Dp = _round_up(D, 128)
    Ip = _round_up(I, 128)
    if (Dp, Ip) != (D, I):
        w1 = jnp.pad(w1, ((0, Dp - D), (0, Ip - I)))
        w2 = jnp.pad(w2, ((0, Ip - I), (0, Dp - D)))
        b1 = jnp.pad(b1, ((0, Ip - I),))
        b2 = jnp.pad(b2, ((0, Dp - D),))
    return {
        "w1": w1,
        "b1": b1.astype(jnp.float32).reshape(1, Ip),
        "w2": w2,
        "b2": b2.astype(jnp.float32).reshape(1, Dp),
        "D": D, "Dp": Dp, "I": I, "Ip": Ip,
    }


def gpt2_mlp_flex_prepared(hidden_states, prepared, *, primer_square,
                           tm=None, ti=None):
    """Fused GPT2MLPFlex forward using pre-padded weights.

    hidden_states: (B, S, D).  Pass bf16 hidden_states / weights for the bf16
    MXU path; biases stay f32 and accumulation is f32.
    """
    w1p, b1_2d, w2p, b2_2d = (prepared["w1"], prepared["b1"],
                              prepared["w2"], prepared["b2"])
    D, Dp, I, Ip = prepared["D"], prepared["Dp"], prepared["I"], prepared["Ip"]

    B, S, Dx = hidden_states.shape
    assert Dx == D, "hidden_states last dim must match c_fc input dim"
    M = B * S
    x2d = hidden_states.reshape(M, D)
    if Dp != D:
        # Activation-sized pad only (weights were padded once at load time).
        x2d = jnp.pad(x2d, ((0, 0), (0, Dp - D)))

    budget, vmem_limit = _vmem_budget()
    # Sublane alignment for the row tile (8 for 32-bit, 16 for 16-bit dtypes).
    sub = 16 if hidden_states.dtype.itemsize == 2 else 8
    auto_tm, auto_ti = _select_tiles(M, Dp, Ip,
                                     hidden_states.dtype.itemsize,
                                     w1p.dtype.itemsize,
                                     hidden_states.dtype.itemsize,
                                     budget, sub)
    tm = auto_tm if tm is None else _round_up(min(tm, _round_up(M, sub)), sub)
    if ti is None:
        ti = auto_ti
    else:
        ti = min(_round_up(ti, 128), Ip)
        if Ip % ti != 0:
            ti = Ip  # fall back to full residency for exactness

    Mp = _round_up(M, tm)
    if Mp != M:
        x2d = jnp.pad(x2d, ((0, Mp - M), (0, 0)))

    compiler_params = pltpu.CompilerParams(
        dimension_semantics=("parallel",) if ti == Ip else ("parallel", "arbitrary"),
        vmem_limit_bytes=vmem_limit,
    )

    if ti == Ip:
        # Weights VMEM-resident: constant block index -> each weight DMA'd once.
        out2d = pl.pallas_call(
            functools.partial(mlp_kernel_resident, primer_square=primer_square),
            out_shape=jax.ShapeDtypeStruct((Mp, Dp), hidden_states.dtype),
            grid_spec=pltpu.PrefetchScalarGridSpec(
                num_scalar_prefetch=0,
                grid=(Mp // tm,),
                in_specs=[
                    pl.BlockSpec((tm, Dp), lambda i: (i, 0)),   # x rows
                    pl.BlockSpec((Dp, Ip), lambda i: (0, 0)),   # W1 (resident)
                    pl.BlockSpec((1, Ip), lambda i: (0, 0)),    # b1
                    pl.BlockSpec((Ip, Dp), lambda i: (0, 0)),   # W2 (resident)
                    pl.BlockSpec((1, Dp), lambda i: (0, 0)),    # b2
                ],
                out_specs=pl.BlockSpec((tm, Dp), lambda i: (i, 0)),
            ),
            compiler_params=compiler_params,
        )(x2d, w1p, b1_2d, w2p, b2_2d)
    else:
        # Streamed weight slices with f32 accumulator; reduction axis (I) last.
        out2d = pl.pallas_call(
            functools.partial(mlp_kernel_streamed, primer_square=primer_square),
            out_shape=jax.ShapeDtypeStruct((Mp, Dp), hidden_states.dtype),
            grid_spec=pltpu.PrefetchScalarGridSpec(
                num_scalar_prefetch=0,
                grid=(Mp // tm, Ip // ti),
                in_specs=[
                    pl.BlockSpec((tm, Dp), lambda i, j: (i, 0)),   # x rows
                    pl.BlockSpec((Dp, ti), lambda i, j: (0, j)),   # W1 slice
                    pl.BlockSpec((1, ti), lambda i, j: (0, j)),    # b1 slice
                    pl.BlockSpec((ti, Dp), lambda i, j: (j, 0)),   # W2 slice
                    pl.BlockSpec((1, Dp), lambda i, j: (0, 0)),    # b2
                ],
                out_specs=pl.BlockSpec((tm, Dp), lambda i, j: (i, 0)),
                scratch_shapes=[pltpu.VMEM((tm, Dp), jnp.float32)],
            ),
            compiler_params=compiler_params,
        )(x2d, w1p, b1_2d, w2p, b2_2d)

    return out2d[:M, :D].reshape(B, S, D)


def gpt2_mlp_flex(hidden_states, w1, b1, w2, b2, *, primer_square,
                  tm=None, ti=None):
    """Convenience wrapper (pads weights per call; prefer pad_mlp_weights once)."""
    return gpt2_mlp_flex_prepared(hidden_states, pad_mlp_weights(w1, b1, w2, b2),
                                  primer_square=primer_square, tm=tm, ti=ti)


def reference_mlp(hidden_states, w1, b1, w2, b2, *, primer_square):
    x = hidden_states.astype(jnp.float32)
    h = x @ w1.astype(jnp.float32) + b1.astype(jnp.float32)
    h = _gelu_new(h)
    if primer_square:
        h = h * h
    return h @ w2.astype(jnp.float32) + b2.astype(jnp.float32)


if __name__ == "__main__":
    # --- Test 1: small GPT-2-like config, f32, weight-resident path. ---
    B, S, D = 2, 8, 32
    I = 4 * D
    primer_square = True

    key = jax.random.PRNGKey(0)
    kx, kw1, kw2 = jax.random.split(key, 3)
    x = jax.random.normal(kx, (B, S, D), dtype=jnp.float32)
    # Conv1D init: weight ~ N(0, 0.02), bias zeros; layout (in, out).
    w1 = 0.02 * jax.random.normal(kw1, (D, I), dtype=jnp.float32)
    b1 = jnp.zeros((I,), dtype=jnp.float32)
    w2 = 0.02 * jax.random.normal(kw2, (I, D), dtype=jnp.float32)
    b2 = jnp.zeros((D,), dtype=jnp.float32)

    prepared = pad_mlp_weights(w1, b1, w2, b2)   # one-time weight prep

    out = gpt2_mlp_flex_prepared(x, prepared, primer_square=primer_square)
    out = jax.block_until_ready(out)
    ref = reference_mlp(x, w1, b1, w2, b2, primer_square=primer_square)
    assert out.shape == (B, S, D)
    assert jnp.allclose(out, ref, atol=1e-5, rtol=1e-5), "mismatch vs reference (f32)"

    # primer_square=False path.
    out_ns = gpt2_mlp_flex_prepared(x, prepared, primer_square=False)
    ref_ns = reference_mlp(x, w1, b1, w2, b2, primer_square=False)
    assert jnp.allclose(out_ns, ref_ns, atol=1e-5, rtol=1e-5), "mismatch (no square)"

    # --- Test 2: streamed-weight (multi reduction step) path, f32, row padding. ---
    B2, S2, D2, I2 = 2, 24, 32, 256   # M=48 -> padded rows; I tiled in 2 steps
    k2 = jax.random.split(jax.random.PRNGKey(1), 3)
    x2 = jax.random.normal(k2[0], (B2, S2, D2), dtype=jnp.float32)
    w1b = 0.02 * jax.random.normal(k2[1], (D2, I2), dtype=jnp.float32)
    b1b = 0.01 * jnp.ones((I2,), dtype=jnp.float32)
    w2b = 0.02 * jax.random.normal(k2[2], (I2, D2), dtype=jnp.float32)
    b2b = 0.01 * jnp.ones((D2,), dtype=jnp.float32)

    prepared2 = pad_mlp_weights(w1b, b1b, w2b, b2b)
    out2 = gpt2_mlp_flex_prepared(x2, prepared2, primer_square=True, tm=32, ti=128)
    ref2 = reference_mlp(x2, w1b, b1b, w2b, b2b, primer_square=True)
    assert jnp.allclose(out2, ref2, atol=1e-5, rtol=1e-5), "mismatch (tiled f32)"

    # --- Test 3: bf16 MXU path (loose tolerance — expected quantization). ---
    xb = x2.astype(jnp.bfloat16)
    prepared3 = pad_mlp_weights(w1b.astype(jnp.bfloat16), b1b,
                                w2b.astype(jnp.bfloat16), b2b)
    out3 = gpt2_mlp_flex_prepared(xb, prepared3, primer_square=True)  # resident path
    ref3 = reference_mlp(xb, w1b.astype(jnp.bfloat16), b1b,
                         w2b.astype(jnp.bfloat16), b2b, primer_square=True)
    assert jnp.allclose(out3.astype(jnp.float32), ref3, atol=5e-3, rtol=5e-2), \
        "mismatch (bf16)"

    # bf16 streamed path as well (exercises both kernels under bf16).
    out3s = gpt2_mlp_flex_prepared(xb, prepared3, primer_square=True, tm=32, ti=128)
    assert jnp.allclose(out3s.astype(jnp.float32), ref3, atol=5e-3, rtol=5e-2), \
        "mismatch (bf16 streamed)"

    jax.block_until_ready((out, out_ns, out2, out3, out3s))
    print("KERNEL_OK")
</pallas_src>

<mosaic_0001>
module attributes {stable_mosaic.version = 11 : i64} {
  func.func @mlp_kernel_resident(%arg0: i32, %arg1: memref<8x128xf32, #tpu.memory_space<vmem>>, %arg2: memref<128x128xf32, #tpu.memory_space<vmem>>, %arg3: memref<1x128xf32, #tpu.memory_space<vmem>>, %arg4: memref<128x128xf32, #tpu.memory_space<vmem>>, %arg5: memref<1x128xf32, #tpu.memory_space<vmem>>, %arg6: memref<8x128xf32, #tpu.memory_space<vmem>>) attributes {dimension_semantics = [#tpu.dimension_semantics<parallel>], iteration_bounds = array<i64: 2>, scalar_prefetch = 0 : i64, scratch_operands = 0 : i64, tpu.core_type = #tpu.core_type<tc>, window_params = [{transform_indices = @transform_0, window_bounds = array<i64: 8, 128>}, {pipeline_mode = #tpu.pipeline_mode<synchronous>, transform_indices = @transform_1, window_bounds = array<i64: 128, 128>}, {pipeline_mode = #tpu.pipeline_mode<synchronous>, transform_indices = @transform_2, window_bounds = array<i64: 1, 128>}, {pipeline_mode = #tpu.pipeline_mode<synchronous>, transform_indices = @transform_3, window_bounds = array<i64: 128, 128>}, {pipeline_mode = #tpu.pipeline_mode<synchronous>, transform_indices = @transform_4, window_bounds = array<i64: 1, 128>}, {transform_indices = @transform_5, window_bounds = array<i64: 8, 128>}]} {
    %c0 = arith.constant 0 : index
    %c0_0 = arith.constant 0 : index
    %0 = vector.load %arg1[%c0, %c0_0] : memref<8x128xf32, #tpu.memory_space<vmem>>, vector<8x128xf32>
    %c0_1 = arith.constant 0 : index
    %c0_2 = arith.constant 0 : index
    %1 = vector.load %arg2[%c0_1, %c0_2] : memref<128x128xf32, #tpu.memory_space<vmem>>, vector<128x128xf32>
    %cst = arith.constant dense<0.000000e+00> : vector<8x128xf32>
    %2 = tpu.matmul %0, %1, %cst {dimension_numbers = #tpu.dot_dimension_numbers<[1], [0], [0], [1], [0, 0, 1, 1], [], []>} : vector<8x128xf32>, vector<128x128xf32>, vector<8x128xf32> -> vector<8x128xf32>
    %c0_3 = arith.constant 0 : index
    %c0_4 = arith.constant 0 : index
    %3 = vector.load %arg3[%c0_3, %c0_4] : memref<1x128xf32, #tpu.memory_space<vmem>>, vector<1x128xf32>
    %4 = vector.broadcast %3 : vector<1x128xf32> to vector<8x128xf32>
    %5 = arith.addf %2, %4 : vector<8x128xf32>
    %cst_5 = arith.constant 5.000000e-01 : f32
    %6 = vector.broadcast %cst_5 : f32 to vector<8x128xf32>
    %7 = arith.mulf %6, %5 : vector<8x128xf32>
    %cst_6 = arith.constant 0.797884583 : f32
    %8 = vector.broadcast %cst_6 : f32 to vector<8x128xf32>
    %9 = arith.mulf %8, %5 : vector<8x128xf32>
    %cst_7 = arith.constant 4.471500e-02 : f32
    %10 = vector.broadcast %cst_7 : f32 to vector<8x128xf32>
    %11 = arith.mulf %10, %5 : vector<8x128xf32>
    %12 = arith.mulf %11, %5 : vector<8x128xf32>
    %cst_8 = arith.constant 1.000000e+00 : f32
    %13 = vector.broadcast %cst_8 : f32 to vector<8x128xf32>
    %14 = arith.addf %13, %12 : vector<8x128xf32>
    %15 = arith.mulf %9, %14 : vector<8x128xf32>
    %16 = math.tanh %15 : vector<8x128xf32>
    %cst_9 = arith.constant 1.000000e+00 : f32
    %17 = vector.broadcast %cst_9 : f32 to vector<8x128xf32>
    %18 = arith.addf %17, %16 : vector<8x128xf32>
    %19 = arith.mulf %7, %18 : vector<8x128xf32>
    %20 = arith.mulf %19, %19 : vector<8x128xf32>
    %c0_10 = arith.constant 0 : index
    %c0_11 = arith.constant 0 : index
    %21 = vector.load %arg4[%c0_10, %c0_11] : memref<128x128xf32, #tpu.memory_space<vmem>>, vector<128x128xf32>
    %cst_12 = arith.constant dense<0.000000e+00> : vector<8x128xf32>
    %22 = tpu.matmul %20, %21, %cst_12 {dimension_numbers = #tpu.dot_dimension_numbers<[1], [0], [0], [1], [0, 0, 1, 1], [], []>} : vector<8x128xf32>, vector<128x128xf32>, vector<8x128xf32> -> vector<8x128xf32>
    %c0_13 = arith.constant 0 : index
    %c0_14 = arith.constant 0 : index
    %23 = vector.load %arg5[%c0_13, %c0_14] : memref<1x128xf32, #tpu.memory_space<vmem>>, vector<1x128xf32>
    %24 = vector.broadcast %23 : vector<1x128xf32> to vector<8x128xf32>
    %25 = arith.addf %22, %24 : vector<8x128xf32>
    %c0_15 = arith.constant 0 : index
    %c0_16 = arith.constant 0 : index
    %26 = vector.load %arg6[%c0_15, %c0_16] : memref<8x128xf32, #tpu.memory_space<vmem>>, vector<8x128xf32>
    tpu.vector_store %arg6[%c0_15, %c0_16], %25 {strides = array<i32>} : memref<8x128xf32, #tpu.memory_space<vmem>>, vector<8x128xf32>,
    return
  }
  func.func @transform_0(%arg0: i32) -> (i32, i32) {
    %c0_i32 = arith.constant 0 : i32
    %c0_i32_0 = arith.constant 0 : i32
    return %arg0, %c0_i32 : i32, i32
  }
  func.func @transform_1(%arg0: i32) -> (i32, i32) {
    %c0_i32 = arith.constant 0 : i32
    %c0_i32_0 = arith.constant 0 : i32
    %c0_i32_1 = arith.constant 0 : i32
    return %c0_i32, %c0_i32_0 : i32, i32
  }
  func.func @transform_2(%arg0: i32) -> (i32, i32) {
    %c0_i32 = arith.constant 0 : i32
    %c0_i32_0 = arith.constant 0 : i32
    %c0_i32_1 = arith.constant 0 : i32
    return %c0_i32, %c0_i32_0 : i32, i32
  }
  func.func @transform_3(%arg0: i32) -> (i32, i32) {
    %c0_i32 = arith.constant 0 : i32
    %c0_i32_0 = arith.constant 0 : i32
    %c0_i32_1 = arith.constant 0 : i32
    return %c0_i32, %c0_i32_0 : i32, i32
  }
  func.func @transform_4(%arg0: i32) -> (i32, i32) {
    %c0_i32 = arith.constant 0 : i32
    %c0_i32_0 = arith.constant 0 : i32
    %c0_i32_1 = arith.constant 0 : i32
    return %c0_i32, %c0_i32_0 : i32, i32
  }
  func.func @transform_5(%arg0: i32) -> (i32, i32) {
    %c0_i32 = arith.constant 0 : i32
    %c0_i32_0 = arith.constant 0 : i32
    return %arg0, %c0_i32 : i32, i32
  }
}

</mosaic_0001>

<llo_original>
// kernel: tpu_custom_call.1
$region0: #{tpu_custom_call.1}
  #allocation0 [shape = 'u32[]', space=smem, size = 0x4, offset = 0x4, fixed_abs, tag = 'smem constant byte address 0x4 - core index']
  #allocation1 [shape = 'u32[144,128]{1,0:T(1,128)}', space=vmem, size = 0x12000, scoped, tag = 'internal scratch']
  %s0 = inlined_call_operand.hbm [shape: f32[16,128], index: 0, kind: input, shape index: {}]
  %s1 = inlined_call_operand.hbm [shape: f32[128,128], index: 1, kind: input, shape index: {}]
  %s2 = inlined_call_operand.vmem [shape: f32[1,128], index: 2, kind: input, shape index: {}]
  %s3 = inlined_call_operand.hbm [shape: f32[128,128], index: 3, kind: input, shape index: {}]
  %s4 = inlined_call_operand.vmem [shape: f32[1,128], index: 4, kind: input, shape index: {}]
  %s5 = inlined_call_operand.hbm [shape: f32[16,128], index: 5, kind: output, shape index: {}]
  %s6 = sld [smem:[#allocation0]]
  $region65: #{tpu_custom_call.1} parent=0
    _
  %s8 = ssub.s32 1, %s6
  %s9 = scalar_select 0, %s8, %s6
  $region1: #{tpu_custom_call.1} parent=0
    #allocation2 [shape = 'u8[8192]{0}', space=vmem, size = 0x2000, scoped, tag = 'input window, operand 0']
    #allocation3 [shape = 's32[2]{0}', space=sflag, size = 0x8, scoped, tag = 'scoped memory for tpu_custom_call.1']
    #allocation4 [shape = 's32[2]{0}', space=sflag, size = 0x8, scoped, tag = 'scoped memory for tpu_custom_call.1']
    #allocation5 [shape = 'u8[65536]{0}', space=vmem, size = 0x10000, scoped, tag = 'input window, operand 1, single buffered']
    #allocation6 [shape = 's32[1]{0}', space=sflag, size = 0x4, scoped, tag = 'scoped memory for tpu_custom_call.1']
    #allocation7 [shape = 'u8[65536]{0}', space=vmem, size = 0x10000, scoped, tag = 'input window, operand 3, single buffered']
    #allocation8 [shape = 'u8[8192]{0}', space=vmem, size = 0x2000, scoped, tag = 'output window, operand 0']
    %10 = vsyncpa [#allocation3], 0
    %s11 = scalar_lea.sflag [#allocation3], 1
    %12 = vsyncpa %s11, 0
    %13 = vsyncpa [#allocation6], 0
    %14 = vsyncpa [#allocation4], 0
    %s15 = scalar_lea.sflag [#allocation4], 1
    %16 = vsyncpa %s15, 0
    loop: start=0, step=1, limit=4
    $region2: #{tpu_custom_call.1} parent=1 // loop_pre_header
      _
    $region3: #{tpu_custom_call.1} parent=1 // loop_header
      %s18 = sphi 0, %s22
      %p19 = scmp.ge.s32.totalorder %s18, 4
      %s28 = sphi 0, %s30
      %s31 = sphi 0, %s28
      %s32 = sphi 0, %s31
      %s48 = sphi 0, %s32
      %s52 = sphi 0, %s52
      %s54 = sphi 0, %s52
      %s55 = sphi 0, %s54
      %s69 = sphi 0, %s55
      %s73 = sphi 0, %s73
      %s75 = sphi 0, %s73
      %s76 = sphi 0, %s75
      %s90 = sphi 0, %s76
      %s94 = sphi 0, %s94
      %s96 = sphi 0, %s94
      %s97 = sphi 0, %s96
      %s111 = sphi 0, %s97
      %s115 = sphi 0, %s115
      %s117 = sphi 0, %s115
      %s118 = sphi 0, %s117
      %s132 = sphi 0, %s118
      %s138 = sphi 0, %s140
      %s141 = sphi 0, %s138
      %s142 = sphi 0, %s141
      %s158 = sphi 0, %s142
    $region4: #{tpu_custom_call.1} parent=1 // loop_header_branch
      %21 = sbr.rel (%p19) target = $region8
    $region5: #{tpu_custom_call.1} parent=1 // loop_body
      %s23 = ssub.s32 %s18, 1
      %s24 = ssub.s32 %s18, 2
      %s25 = sadd.s32 %s18, 1
      %s26 = ssub.s32 %s18, %s25
      %p27 = scmp.eq.s32.totalorder %s26, 0
      %s29 = sadd.s32 %s28, 1
      %s30 = scalar_select %p27, %s28, %s29
      %p33 = pneg %p27
      %p34 = scmp.eq.s32.totalorder %s18, 1
      %p35 = por %p33, %p34
      %p36 = scmp.ne.s32.totalorder %s28, %s31
      %p37 = scmp.eq.s32.totalorder %s18, 0
      %p38 = por %p36, %p37
      %p39 = scmp.ne.s32.totalorder %s28, %s31
      %p40 = scmp.eq.s32.totalorder %s23, 1
      %p41 = por %p39, %p40
      %p42 = scmp.ne.s32.totalorder %s31, %s32
      %p43 = scmp.eq.s32.totalorder %s23, 0
      %p44 = por %p42, %p43
      %p45 = scmp.ne.s32.totalorder %s31, %s32
      %p46 = scmp.eq.s32.totalorder %s24, 1
      %p47 = por %p45, %p46
      %p49 = scmp.ne.s32.totalorder %s32, %s48
      %p50 = scmp.eq.s32.totalorder %s24, 0
      %p51 = por %p49, %p50
      %s53 = sadd.s32 %s52, 1
      %p56 = scmp.eq.s32.totalorder %s18, 1
      %p57 = scmp.ne.s32.totalorder %s52, %s54
      %p58 = scmp.eq.s32.totalorder %s18, 0
      %p59 = por %p57, %p58
      %p60 = scmp.ne.s32.totalorder %s52, %s54
      %p61 = scmp.eq.s32.totalorder %s23, 1
      %p62 = por %p60, %p61
      %p63 = scmp.ne.s32.totalorder %s54, %s55
      %p64 = scmp.eq.s32.totalorder %s23, 0
      %p65 = por %p63, %p64
      %p66 = scmp.ne.s32.totalorder %s54, %s55
      %p67 = scmp.eq.s32.totalorder %s24, 1
      %p68 = por %p66, %p67
      %p70 = scmp.ne.s32.totalorder %s55, %s69
      %p71 = scmp.eq.s32.totalorder %s24, 0
      %p72 = por %p70, %p71
      %s74 = sadd.s32 %s73, 1
      %p77 = scmp.eq.s32.totalorder %s18, 1
      %p78 = scmp.ne.s32.totalorder %s73, %s75
      %p79 = scmp.eq.s32.totalorder %s18, 0
      %p80 = por %p78, %p79
      %p81 = scmp.ne.s32.totalorder %s73, %s75
      %p82 = scmp.eq.s32.totalorder %s23, 1
      %p83 = por %p81, %p82
      %p84 = scmp.ne.s32.totalorder %s75, %s76
      %p85 = scmp.eq.s32.totalorder %s23, 0
      %p86 = por %p84, %p85
      %p87 = scmp.ne.s32.totalorder %s75, %s76
      %p88 = scmp.eq.s32.totalorder %s24, 1
      %p89 = por %p87, %p88
      %p91 = scmp.ne.s32.totalorder %s76, %s90
      %p92 = scmp.eq.s32.totalorder %s24, 0
      %p93 = por %p91, %p92
      %s95 = sadd.s32 %s94, 1
      %p98 = scmp.eq.s32.totalorder %s18, 1
      %p99 = scmp.ne.s32.totalorder %s94, %s96
      %p100 = scmp.eq.s32.totalorder %s18, 0
      %p101 = por %p99, %p100
      %p102 = scmp.ne.s32.totalorder %s94, %s96
      %p103 = scmp.eq.s32.totalorder %s23, 1
      %p104 = por %p102, %p103
      %p105 = scmp.ne.s32.totalorder %s96, %s97
      %p106 = scmp.eq.s32.totalorder %s23, 0
      %p107 = por %p105, %p106
      %p108 = scmp.ne.s32.totalorder %s96, %s97
      %p109 = scmp.eq.s32.totalorder %s24, 1
      %p110 = por %p108, %p109
      %p112 = scmp.ne.s32.totalorder %s97, %s111
      %p113 = scmp.eq.s32.totalorder %s24, 0
      %p114 = por %p112, %p113
      %s116 = sadd.s32 %s115, 1
      %p119 = scmp.eq.s32.totalorder %s18, 1
      %p120 = scmp.ne.s32.totalorder %s115, %s117
      %p121 = scmp.eq.s32.totalorder %s18, 0
      %p122 = por %p120, %p121
      %p123 = scmp.ne.s32.totalorder %s115, %s117
      %p124 = scmp.eq.s32.totalorder %s23, 1
      %p125 = por %p123, %p124
      %p126 = scmp.ne.s32.totalorder %s117, %s118
      %p127 = scmp.eq.s32.totalorder %s23, 0
      %p128 = por %p126, %p127
      %p129 = scmp.ne.s32.totalorder %s117, %s118
      %p130 = scmp.eq.s32.totalorder %s24, 1
      %p131 = por %p129, %p130
      %p133 = scmp.ne.s32.totalorder %s118, %s132
      %p134 = scmp.eq.s32.totalorder %s24, 0
      %p135 = por %p133, %p134
      %s136 = ssub.s32 %s18, %s25
      %p137 = scmp.eq.s32.totalorder %s136, 0
      %s139 = sadd.s32 %s138, 1
      %s140 = scalar_select %p137, %s138, %s139
      %p143 = pneg %p137
      %p144 = scmp.eq.s32.totalorder %s18, 1
      %p145 = por %p143, %p144
      %p146 = scmp.ne.s32.totalorder %s138, %s141
      %p147 = scmp.eq.s32.totalorder %s18, 0
      %p148 = por %p146, %p147
      %p149 = scmp.ne.s32.totalorder %s138, %s141
      %p150 = scmp.eq.s32.totalorder %s23, 1
      %p151 = por %p149, %p150
      %p152 = scmp.ne.s32.totalorder %s141, %s142
      %p153 = scmp.eq.s32.totalorder %s23, 0
      %p154 = por %p152, %p153
      %p155 = scmp.ne.s32.totalorder %s141, %s142
      %p156 = scmp.eq.s32.totalorder %s24, 1
      %p157 = por %p155, %p156
      %p159 = scmp.ne.s32.totalorder %s142, %s158
      %p160 = scmp.eq.s32.totalorder %s24, 0
      %p161 = por %p159, %p160
      %p162 = scmp.le.s32.totalorder 1, %s18
      %p163 = scmp.lt.s32.totalorder %s18, 3
      %p164 = pnand %p162, %p163
      %p165 = pneg %p164
      // Predicated region
      $region9: #{tpu_custom_call.1} parent=5 // pred_check
        _
      $region10: #{tpu_custom_call.1} parent=5 // pred_check_branch
        %167 = sbr.rel (%p164) target = $region12
      $region11: #{tpu_custom_call.1} parent=5 // pred_region
        %s168 = ssub.s32 %s18, 1
        // Predicated region
        $region13: #{tpu_custom_call.1} parent=11 // pred_check
          %p169 = pneg %p65
        $region14: #{tpu_custom_call.1} parent=11 // pred_check_branch
          %171 = sbr.rel (%p169) target = $region16
        $region15: #{tpu_custom_call.1} parent=11 // pred_region
          %s173 = ssub.s32 2048, 2048
          %174 = vsyncadd [#allocation6], %s173
          %s175 = sshll.u32 [#allocation5], 4
          %s176 = int_to_ptr.vmem [resolvable:$true] %s175
          %181 = dma.hbm_to_vmem [thread:$0]  %s1, 2048, %s176, [#allocation6], 128, 128, 8
        $region16: #{tpu_custom_call.1} parent=11 // pred_fallthru
          _
        // Predicated region
        $region17: #{tpu_custom_call.1} parent=11 // pred_check
          %p182 = pneg %p86
        $region18: #{tpu_custom_call.1} parent=11 // pred_check_branch
          %184 = sbr.rel (%p182) target = $region20
        $region19: #{tpu_custom_call.1} parent=11 // pred_region
          _
        $region20: #{tpu_custom_call.1} parent=11 // pred_fallthru
          _
        // Predicated region
        $region21: #{tpu_custom_call.1} parent=11 // pred_check
          %p185 = pneg %p107
        $region22: #{tpu_custom_call.1} parent=11 // pred_check_branch
          %187 = sbr.rel (%p185) target = $region24
        $region23: #{tpu_custom_call.1} parent=11 // pred_region
          %s189 = ssub.s32 2048, 2048
          %190 = vsyncadd [#allocation6], %s189
          %s191 = sshll.u32 [#allocation7], 4
          %s192 = int_to_ptr.vmem [resolvable:$true] %s191
          %197 = dma.hbm_to_vmem [thread:$0]  %s3, 2048, %s192, [#allocation6], 128, 128, 8
        $region24: #{tpu_custom_call.1} parent=11 // pred_fallthru
          _
        // Predicated region
        $region25: #{tpu_custom_call.1} parent=11 // pred_check
          %p198 = pneg %p128
        $region26: #{tpu_custom_call.1} parent=11 // pred_check_branch
          %200 = sbr.rel (%p198) target = $region28
        $region27: #{tpu_custom_call.1} parent=11 // pred_region
          _
        $region28: #{tpu_custom_call.1} parent=11 // pred_fallthru
          _
      $region12: #{tpu_custom_call.1} parent=5 // pred_fallthru
        _
      %p201 = scmp.lt.s32.totalorder %s18, 2
      // Predicated region
      $region29: #{tpu_custom_call.1} parent=5 // pred_check
        %p202 = pneg %p201
      $region30: #{tpu_custom_call.1} parent=5 // pred_check_branch
        %204 = sbr.rel (%p202) target = $region32
      $region31: #{tpu_custom_call.1} parent=5 // pred_region
        // Predicated region
        $region33: #{tpu_custom_call.1} parent=31 // pred_check
          %p205 = pneg %p38
        $region34: #{tpu_custom_call.1} parent=31 // pred_check_branch
          %207 = sbr.rel (%p205) target = $region36
        $region35: #{tpu_custom_call.1} parent=31 // pred_region
          %s208 = sand.u32 %s28, 1
          %s209 = scalar_lea.sflag [#allocation3], %s208
          %s210 = sand.u32 %s28, 1
          %s211 = smul.addr %s210, 8
          %s212 = scalar_lea.vmem [#allocation2], %s211
          %s214 = ssub.s32 128, 128
          %215 = vsyncadd %s209, %s214
          %s216 = smul.addr %s18, 128
          %s217 = scalar_lea.hbm %s0, %s216
          %s219 = sshll.u32 %s212, 4
          %s220 = int_to_ptr.vmem [resolvable:$true] %s219
          %222 = dma.hbm_to_vmem [thread:$0]  %s217, 128, %s220, %s209
        $region36: #{tpu_custom_call.1} parent=31 // pred_fallthru
          _
      $region32: #{tpu_custom_call.1} parent=5 // pred_fallthru
        _
      %p223 = scmp.le.s32.totalorder 1, %s18
      %p224 = scmp.lt.s32.totalorder %s18, 3
      %p225 = pnand %p223, %p224
      %p226 = pneg %p225
      // Predicated region
      $region37: #{tpu_custom_call.1} parent=5 // pred_check
        _
      $region38: #{tpu_custom_call.1} parent=5 // pred_check_branch
        %228 = sbr.rel (%p225) target = $region40
      $region39: #{tpu_custom_call.1} parent=5 // pred_region
        %s229 = ssub.s32 %s18, 1
        %s230 = sand.u32 %s31, 1
        %s231 = scalar_lea.sflag [#allocation3], %s230
        %s232 = sand.u32 %s31, 1
        %s233 = smul.addr %s232, 8
        %s234 = scalar_lea.vmem [#allocation2], %s233
        // Predicated region
        $region41: #{tpu_custom_call.1} parent=39 // pred_check
          %p235 = pneg %p44
        $region42: #{tpu_custom_call.1} parent=39 // pred_check_branch
          %237 = sbr.rel (%p235) target = $region44
        $region43: #{tpu_custom_call.1} parent=39 // pred_region
          %238 = dma.done %s231, 128
        $region44: #{tpu_custom_call.1} parent=39 // pred_fallthru
          _
        // Predicated region
        $region45: #{tpu_custom_call.1} parent=39 // pred_check
          %p239 = pneg %p65
        $region46: #{tpu_custom_call.1} parent=39 // pred_check_branch
          %241 = sbr.rel (%p239) target = $region48
        $region47: #{tpu_custom_call.1} parent=39 // pred_region
          %242 = dma.done [#allocation6], 2048
        $region48: #{tpu_custom_call.1} parent=39 // pred_fallthru
          _
        // Predicated region
        $region49: #{tpu_custom_call.1} parent=39 // pred_check
          %p243 = pneg %p107
        $region50: #{tpu_custom_call.1} parent=39 // pred_check_branch
          %245 = sbr.rel (%p243) target = $region52
        $region51: #{tpu_custom_call.1} parent=39 // pred_region
          %246 = dma.done [#allocation6], 2048
        $region52: #{tpu_custom_call.1} parent=39 // pred_fallthru
          _
        %s247 = sand.u32 %s31, 1
        %s248 = scalar_lea.sflag [#allocation3], %s247
        %s249 = sand.u32 %s31, 1
        %s250 = smul.addr %s249, 8
        %s251 = scalar_lea.vmem [#allocation2], %s250
        %p252 = pneg %p44
        %p253 = pneg %p41
        %p254 = pneg %p65
        %p255 = pneg %p62
        %p256 = pneg %p86
        %p257 = pneg %p83
        %p258 = pneg %p107
        %p259 = pneg %p104
        %p260 = pneg %p128
        %p261 = pneg %p125
        %p262 = pneg %p154
        %p263 = pneg %p151
        %s264 = sand.u32 %s141, 1
        %s265 = scalar_lea.sflag [#allocation4], %s264
        %s266 = sand.u32 %s141, 1
        %s267 = smul.addr %s266, 8
        %s268 = scalar_lea.vmem [#allocation8], %s267
        %v269 = vld [vmem:[%s234] sm:$0xff]
        %v270 = vld [vmem:[#allocation5] sm:$0xff]
        %v271 = vld [vmem:[#allocation5 + $0x8] sm:$0xff]
        %v272 = vld [vmem:[#allocation5 + $0x10] sm:$0xff]
        %v273 = vld [vmem:[#allocation5 + $0x18] sm:$0xff]
        %v274 = vld [vmem:[#allocation5 + $0x20] sm:$0xff]
        %v275 = vld [vmem:[#allocation5 + $0x28] sm:$0xff]
        %v276 = vld [vmem:[#allocation5 + $0x30] sm:$0xff]
        %v277 = vld [vmem:[#allocation5 + $0x38] sm:$0xff]
        %v278 = vld [vmem:[#allocation5 + $0x40] sm:$0xff]
        %v279 = vld [vmem:[#allocation5 + $0x48] sm:$0xff]
        %v280 = vld [vmem:[#allocation5 + $0x50] sm:$0xff]
        %v281 = vld [vmem:[#allocation5 + $0x58] sm:$0xff]
        %v282 = vld [vmem:[#allocation5 + $0x60] sm:$0xff]
        %v283 = vld [vmem:[#allocation5 + $0x68] sm:$0xff]
        %v284 = vld [vmem:[#allocation5 + $0x70] sm:$0xff]
        %v285 = vld [vmem:[#allocation5 + $0x78] sm:$0xff]
        %v286 = vld [vmem:[%s2] sm:$0x1]
        %v288 = vlaneseq
        %v289 = vshrl.u32 %v288, 7
        %v290 = vsub.s32 0, %v289
        %v291 = vrot.slane %v286, %v290
        %293 = vmatprep.subr.mxu0 0.0
        %294 = vmatpush1.msra.mxu0 %v270
        %295 = vmatprep.subr.mxu0 0.0
        %296 = vmatpush1.msra.mxu0 %v271
        %297 = vmatprep.subr.mxu0 0.0
        %298 = vmatpush1.msra.mxu0 %v272
        %299 = vmatprep.subr.mxu0 0.0
        %300 = vmatpush1.msra.mxu0 %v273
        %301 = vmatprep.subr.mxu0 0.0
        %302 = vmatpush1.msra.mxu0 %v274
        %303 = vmatprep.subr.mxu0 0.0
        %304 = vmatpush1.msra.mxu0 %v275
        %305 = vmatprep.subr.mxu0 0.0
        %306 = vmatpush1.msra.mxu0 %v276
        %307 = vmatprep.subr.mxu0 0.0
        %308 = vmatpush1.msra.mxu0 %v277
        %309 = vmatprep.subr.mxu0 0.0
        %310 = vmatpush1.msra.mxu0 %v278
        %311 = vmatprep.subr.mxu0 0.0
        %312 = vmatpush1.msra.mxu0 %v279
        %313 = vmatprep.subr.mxu0 0.0
        %314 = vmatpush1.msra.mxu0 %v280
        %315 = vmatprep.subr.mxu0 0.0
        %316 = vmatpush1.msra.mxu0 %v281
        %317 = vmatprep.subr.mxu0 0.0
        %318 = vmatpush1.msra.mxu0 %v282
        %319 = vmatprep.subr.mxu0 0.0
        %320 = vmatpush1.msra.mxu0 %v283
        %321 = vmatprep.subr.mxu0 0.0
        %322 = vmatpush1.msra.mxu0 %v284
        %323 = vmatprep.subr.mxu0 0.0
        %324 = vmatpush1.msra.mxu0 %v285
        %325 = vmatprep.subr.mxu0 0.0
        %326 = vmatpush1.msra.mxu0 0.0
        %327 = vmatprep.subr.mxu0 0.0
        %328 = vmatpush1.msra.mxu0 0.0
        %329 = vmatprep.subr.mxu0 0.0
        %330 = vmatpush1.msra.mxu0 0.0
        %331 = vmatprep.subr.mxu0 0.0
        %332 = vmatpush1.msra.mxu0 0.0
        %333 = vmatprep.subr.mxu0 0.0
        %334 = vmatpush1.msra.mxu0 0.0
        %335 = vmatprep.subr.mxu0 0.0
        %336 = vmatpush1.msra.mxu0 0.0
        %337 = vmatprep.subr.mxu0 0.0
        %338 = vmatpush1.msra.mxu0 0.0
        %339 = vmatprep.subr.mxu0 0.0
        %340 = vmatpush1.msra.mxu0 0.0
        %341 = vmatprep.subr.mxu0 0.0
        %342 = vmatpush1.msra.mxu0 0.0
        %343 = vmatprep.subr.mxu0 0.0
        %344 = vmatpush1.msra.mxu0 0.0
        %345 = vmatprep.subr.mxu0 0.0
        %346 = vmatpush1.msra.mxu0 0.0
        %347 = vmatprep.subr.mxu0 0.0
        %348 = vmatpush1.msra.mxu0 0.0
        %349 = vmatprep.subr.mxu0 0.0
        %350 = vmatpush1.msra.mxu0 0.0
        %351 = vmatprep.subr.mxu0 0.0
        %352 = vmatpush1.msra.mxu0 0.0
        %353 = vmatprep.subr.mxu0 0.0
        %354 = vmatpush1.msra.mxu0 0.0
        %355 = vmatprep.subr.mxu0 0.0
        %356 = vmatpush1.msra.mxu0 0.0
        %357 = vmatprep.mubr.f32.mxu0 0.0
        %358 = vmatmul.mubr.f32.gmra.mrb[0].mxu0 %v269
        %v359 = vpop.f32.mrb[0].mxu0
        %v360 = vadd.f32 %v291, %v359
        %v361 = vpop.f32.mrb[0].mxu0
        %362 = vdwg.mxu0
        %v363 = vmul.f32 %v360, 0.5
        %v364 = vmul.f32 %v360, 0.7978846
        %v365 = vmul.f32 %v360, 0.044715
        %v366 = vmul.f32 %v365, %v360
        %v367 = vadd.f32 %v366, 1.0
        %v368 = vmul.f32 %v364, %v367
        %v369 = vtanh.pop %v368
        %v370 = vadd.f32 %v369, 1.0
        %v371 = vmul.f32 %v363, %v370
        %v372 = vmul.f32 %v371, %v371
        %v373 = vld [vmem:[#allocation7] sm:$0xff]
        %v374 = vld [vmem:[#allocation7 + $0x8] sm:$0xff]
        %v375 = vld [vmem:[#allocation7 + $0x10] sm:$0xff]
        %v376 = vld [vmem:[#allocation7 + $0x18] sm:$0xff]
        %v377 = vld [vmem:[#allocation7 + $0x20] sm:$0xff]
        %v378 = vld [vmem:[#allocation7 + $0x28] sm:$0xff]
        %v379 = vld [vmem:[#allocation7 + $0x30] sm:$0xff]
        %v380 = vld [vmem:[#allocation7 + $0x38] sm:$0xff]
        %v381 = vld [vmem:[#allocation7 + $0x40] sm:$0xff]
        %v382 = vld [vmem:[#allocation7 + $0x48] sm:$0xff]
        %v383 = vld [vmem:[#allocation7 + $0x50] sm:$0xff]
        %v384 = vld [vmem:[#allocation7 + $0x58] sm:$0xff]
        %v385 = vld [vmem:[#allocation7 + $0x60] sm:$0xff]
        %v386 = vld [vmem:[#allocation7 + $0x68] sm:$0xff]
        %v387 = vld [vmem:[#allocation7 + $0x70] sm:$0xff]
        %v388 = vld [vmem:[#allocation7 + $0x78] sm:$0xff]
        %v389 = vld [vmem:[%s4] sm:$0x1]
        %v391 = vlaneseq
        %v392 = vshrl.u32 %v391, 7
        %v393 = vsub.s32 0, %v392
        %v394 = vrot.slane %v389, %v393
        %396 = vmatprep.subr.mxu0 0.0
        %397 = vmatpush1.msra.mxu0 %v373
        %398 = vmatprep.subr.mxu0 0.0
        %399 = vmatpush1.msra.mxu0 %v374
        %400 = vmatprep.subr.mxu0 0.0
        %401 = vmatpush1.msra.mxu0 %v375
        %402 = vmatprep.subr.mxu0 0.0
        %403 = vmatpush1.msra.mxu0 %v376
        %404 = vmatprep.subr.mxu0 0.0
        %405 = vmatpush1.msra.mxu0 %v377
        %406 = vmatprep.subr.mxu0 0.0
        %407 = vmatpush1.msra.mxu0 %v378
        %408 = vmatprep.subr.mxu0 0.0
        %409 = vmatpush1.msra.mxu0 %v379
        %410 = vmatprep.subr.mxu0 0.0
        %411 = vmatpush1.msra.mxu0 %v380
        %412 = vmatprep.subr.mxu0 0.0
        %413 = vmatpush1.msra.mxu0 %v381
        %414 = vmatprep.subr.mxu0 0.0
        %415 = vmatpush1.msra.mxu0 %v382
        %416 = vmatprep.subr.mxu0 0.0
        %417 = vmatpush1.msra.mxu0 %v383
        %418 = vmatprep.subr.mxu0 0.0
        %419 = vmatpush1.msra.mxu0 %v384
        %420 = vmatprep.subr.mxu0 0.0
        %421 = vmatpush1.msra.mxu0 %v385
        %422 = vmatprep.subr.mxu0 0.0
        %423 = vmatpush1.msra.mxu0 %v386
        %424 = vmatprep.subr.mxu0 0.0
        %425 = vmatpush1.msra.mxu0 %v387
        %426 = vmatprep.subr.mxu0 0.0
        %427 = vmatpush1.msra.mxu0 %v388
        %428 = vmatprep.subr.mxu0 0.0
        %429 = vmatpush1.msra.mxu0 0.0
        %430 = vmatprep.subr.mxu0 0.0
        %431 = vmatpush1.msra.mxu0 0.0
        %432 = vmatprep.subr.mxu0 0.0
        %433 = vmatpush1.msra.mxu0 0.0
        %434 = vmatprep.subr.mxu0 0.0
        %435 = vmatpush1.msra.mxu0 0.0
        %436 = vmatprep.subr.mxu0 0.0
        %437 = vmatpush1.msra.mxu0 0.0
        %438 = vmatprep.subr.mxu0 0.0
        %439 = vmatpush1.msra.mxu0 0.0
        %440 = vmatprep.subr.mxu0 0.0
        %441 = vmatpush1.msra.mxu0 0.0
        %442 = vmatprep.subr.mxu0 0.0
        %443 = vmatpush1.msra.mxu0 0.0
        %444 = vmatprep.subr.mxu0 0.0
        %445 = vmatpush1.msra.mxu0 0.0
        %446 = vmatprep.subr.mxu0 0.0
        %447 = vmatpush1.msra.mxu0 0.0
        %448 = vmatprep.subr.mxu0 0.0
        %449 = vmatpush1.msra.mxu0 0.0
        %450 = vmatprep.subr.mxu0 0.0
        %451 = vmatpush1.msra.mxu0 0.0
        %452 = vmatprep.subr.mxu0 0.0
        %453 = vmatpush1.msra.mxu0 0.0
        %454 = vmatprep.subr.mxu0 0.0
        %455 = vmatpush1.msra.mxu0 0.0
        %456 = vmatprep.subr.mxu0 0.0
        %457 = vmatpush1.msra.mxu0 0.0
        %458 = vmatprep.subr.mxu0 0.0
        %459 = vmatpush1.msra.mxu0 0.0
        %460 = vmatprep.mubr.f32.mxu0 0.0
        %461 = vmatmul.mubr.f32.gmra.mrb[0].mxu0 %v372
        %v462 = vpop.f32.mrb[0].mxu0
        %v463 = vadd.f32 %v394, %v462
        %v464 = vpop.f32.mrb[0].mxu0
        %465 = vdwg.mxu0
        %466 = vst [vmem:[%s268] sm:$0xff] %v463
        %s467 = sand.u32 %s141, 1
        %s468 = scalar_lea.sflag [#allocation4], %s467
        %s469 = sand.u32 %s141, 1
        %s470 = smul.addr %s469, 8
        %s471 = scalar_lea.vmem [#allocation8], %s470
        // Predicated region
        $region53: #{tpu_custom_call.1} parent=39 // pred_check
          %p472 = pneg %p151
        $region54: #{tpu_custom_call.1} parent=39 // pred_check_branch
          %474 = sbr.rel (%p472) target = $region56
        $region55: #{tpu_custom_call.1} parent=39 // pred_region
          %s476 = ssub.s32 128, 128
          %477 = vsyncadd %s468, %s476
          %s478 = smul.addr %s23, 128
          %s479 = scalar_lea.hbm %s5, %s478
          %s481 = sshll.u32 %s471, 4
          %s482 = int_to_ptr.vmem [resolvable:$true] %s481
          %484 = dma.vmem_to_hbm [thread:$0]  %s482, 128, %s479, %s468
        $region56: #{tpu_custom_call.1} parent=39 // pred_fallthru
          _
      $region40: #{tpu_custom_call.1} parent=5 // pred_fallthru
        _
      %p485 = scmp.le.s32.totalorder 2, %s18
      // Predicated region
      $region57: #{tpu_custom_call.1} parent=5 // pred_check
        %p486 = pneg %p485
      $region58: #{tpu_custom_call.1} parent=5 // pred_check_branch
        %488 = sbr.rel (%p486) target = $region60
      $region59: #{tpu_custom_call.1} parent=5 // pred_region
        %s489 = ssub.s32 %s18, 2
        // Predicated region
        $region61: #{tpu_custom_call.1} parent=59 // pred_check
          %p490 = pneg %p157
        $region62: #{tpu_custom_call.1} parent=59 // pred_check_branch
          %492 = sbr.rel (%p490) target = $region64
        $region63: #{tpu_custom_call.1} parent=59 // pred_region
          %s493 = sand.u32 %s142, 1
          %s494 = scalar_lea.sflag [#allocation4], %s493
          %s495 = sand.u32 %s142, 1
          %s496 = smul.addr %s495, 8
          %s497 = scalar_lea.vmem [#allocation8], %s496
          %498 = dma.done %s494, 128
        $region64: #{tpu_custom_call.1} parent=59 // pred_fallthru
          _
      $region60: #{tpu_custom_call.1} parent=5 // pred_fallthru
        _
    $region6: #{tpu_custom_call.1} parent=1 // loop_footer
      %s22 = sadd.s32 1, %s18
    $region7: #{tpu_custom_call.1} parent=1 // loop_footer_branch
      %17 = sbr.rel target = $region3
    $region8: #{tpu_custom_call.1} parent=1 // loop_exit
      _
    %499 = vsyncpa [#allocation3], 1
    %s500 = scalar_lea.sflag [#allocation3], 1
    %501 = vsyncpa %s500, 1
    %502 = vsyncpa [#allocation6], 1
    %503 = vsyncpa [#allocation4], 1
    %s504 = scalar_lea.sflag [#allocation4], 1
    %505 = vsyncpa %s504, 1

</llo_original>
